<compile_context>
chip_gen: v6e
topology: v6e:2x2x1
jax: 0.10.0
libtpu: 0.0.40
codegen_flags: <defaults>
</compile_context>

<pallas_src>
import jax
import jax.numpy as jnp
import numpy as np
from jax.experimental import pallas as pl
from jax.experimental.pallas import tpu as pltpu


# ---------------------------------------------------------------------------
# Kernels
# ---------------------------------------------------------------------------
def _reduce_kernel(x_ref, at1_ref, at2_ref, t_ref):
    # x_ref  : (1, Tc, l, hw)  native-layout tile of the input
    # at1_ref: (Tc, 1, 1)      At1 chunk, pre-scaled by 1/hw
    # at2_ref: (1, hw)         At2^T, pre-scaled by 1/c
    # t_ref  : (1, 1, l, 2)    resident accumulator (same block across k)
    k = pl.program_id(2)

    @pl.when(k == 0)
    def _init():
        t_ref[...] = jnp.zeros_like(t_ref)

    x = x_ref[0].astype(jnp.float32)                      # (Tc, l, hw)
    at1 = at1_ref[...]                                    # (Tc, 1, 1)
    at2 = at2_ref[...]                                    # (1, hw)

    # Channel-axis (leading, non-vreg dim) reductions first: pure VPU adds.
    y1 = jnp.sum(x * at1, axis=0)                         # (l, hw)
    y0 = jnp.sum(x, axis=0)                               # (l, hw)

    # Only two small cross-lane (hw) reductions per tile hit the XLU.
    p1 = jnp.sum(y1, axis=-1, keepdims=True)              # (l, 1)
    p2 = jnp.sum(y0 * at2, axis=-1, keepdims=True)        # (l, 1)

    t_ref[...] += jnp.concatenate([p1, p2], axis=-1)[None, None]   # (1,1,l,2)


def _scale_kernel(x_ref, s_ref, o_ref):
    # x_ref: (1, Tc, Tf);  s_ref: (1, 1, Tf) broadcasts over the channel chunk
    o_ref[...] = (x_ref[...].astype(jnp.float32) * s_ref[...]).astype(o_ref.dtype)


# ---------------------------------------------------------------------------
# Helpers
# ---------------------------------------------------------------------------
def _round_up(v, m):
    return ((v + m - 1) // m) * m


def _pick_block(n, cap, align):
    """Block size for a dim of extent n: n itself if it fits under `cap`, else
    the largest divisor of n that is a multiple of `align` and <= cap, else the
    smallest aligned divisor (minimal legal tile, may exceed cap -- the caller
    sizes vmem_limit from the actual choice), else the full extent (always a
    legal block shape)."""
    if n <= cap:
        return n
    divs = [d for d in range(align, n, align) if n % d == 0]
    small = [d for d in divs if d <= cap]
    if small:
        return max(small)
    if divs:
        return min(divs)
    return n


# ---------------------------------------------------------------------------
# Wrapper
# ---------------------------------------------------------------------------
def sta_forward(x, params):
    b, c, l, h, w = x.shape
    hw = h * w
    f = l * hw
    itemsize = jnp.dtype(x.dtype).itemsize
    hi = jax.lax.Precision.HIGHEST
    mib = 1024 * 1024

    # ---- tiny wrapper-side prep (no full-tensor HBM traffic) ----------------
    xr = x.reshape(b, c, l, hw)                                   # free view
    at1_w = (params["At1"].astype(jnp.float32) * (1.0 / hw)).reshape(c, 1, 1)
    at2_w = (params["At2"].astype(jnp.float32)[:, 0] * (1.0 / c))[None, :]   # (1, hw)

    # ---- pass 1: tiled, pipelined weighted reduction of x -------------------
    # Extra parallel split of the channel reduction so both v7x TensorCores
    # have work when b is small (harmless on single-TC v5e/v6e).
    n_split = 2 if (c % 2 == 0 and c >= 2) else 1
    c_grp = c // n_split
    row_pad_bytes = _round_up(l, 8) * _round_up(hw, 128) * itemsize   # padded VMEM row
    tc_red = _pick_block(c_grp, max(1, (8 * mib) // row_pad_bytes), 1)
    nck = c_grp // tc_red
    tile1 = tc_red * row_pad_bytes
    vmem1 = max(48 * mib, 3 * tile1 + 8 * mib)

    t_raw = pl.pallas_call(
        _reduce_kernel,
        grid=(b, n_split, nck),
        in_specs=[
            pl.BlockSpec((1, tc_red, l, hw),
                         lambda i, s, k: (i, s * nck + k, 0, 0)),
            pl.BlockSpec((tc_red, 1, 1), lambda i, s, k: (s * nck + k, 0, 0)),
            pl.BlockSpec((1, hw), lambda i, s, k: (0, 0)),
        ],
        out_specs=pl.BlockSpec((1, 1, l, 2), lambda i, s, k: (i, s, 0, 0)),
        out_shape=jax.ShapeDtypeStruct((b, n_split, l, 2), jnp.float32),
        compiler_params=pltpu.CompilerParams(
            dimension_semantics=("parallel", "parallel", "arbitrary"),
            vmem_limit_bytes=vmem1),
        cost_estimate=pl.CostEstimate(
            flops=4 * b * c * l * hw, transcendentals=0,
            bytes_accessed=int(x.size) * itemsize + b * n_split * l * 2 * 4),
    )(xr, at1_w, at2_w)

    # ---- pass 2: tiny Et/St MLP + sigmoid + global-mean norm (plain JAX) ----
    t = jnp.sum(t_raw, axis=1)                                    # (b, l, 2)
    t1 = t[:, :, 0]
    t2 = t[:, :, 1]
    h1 = jax.nn.relu(jnp.einsum("bl,rl->br", t1,
                                params["Et1"].astype(jnp.float32), precision=hi))
    v1 = jax.nn.sigmoid(jnp.einsum("br,lr->bl", h1,
                                   params["St1"].astype(jnp.float32), precision=hi))
    h2 = jax.nn.relu(jnp.einsum("bl,rl->br", t2,
                                params["Et2"].astype(jnp.float32), precision=hi))
    v2 = jax.nn.sigmoid(jnp.einsum("br,lr->bl", h2,
                                   params["St2"].astype(jnp.float32), precision=hi))
    s = v1 + v2
    scale = s / jnp.mean(s)                                       # (b, l)

    # ---- pass 3: lane-dense elementwise scaling ------------------------------
    xf = x.reshape(b, c, f)                                       # free view
    # tiny expansion (b*l*hw floats) so the kernel's last dim is lane-dense
    scale_e = jnp.broadcast_to(scale[:, :, None], (b, l, hw)).reshape(b, 1, f)

    tf = _pick_block(f, 32768, 128)
    tf_pad = _round_up(tf, 128)
    tc_sc = _pick_block(c, max(1, (6 * mib) // (tf_pad * itemsize)), 8)
    tile3 = _round_up(tc_sc, 8) * tf_pad * itemsize
    vmem3 = max(48 * mib, 4 * tile3 + 8 * mib)

    out = pl.pallas_call(
        _scale_kernel,
        # c-chunk axis innermost so the (1,1,tf) scale block stays resident.
        grid=(b, f // tf, c // tc_sc),
        in_specs=[
            pl.BlockSpec((1, tc_sc, tf), lambda i, j, k: (i, k, j)),
            pl.BlockSpec((1, 1, tf), lambda i, j, k: (i, 0, j)),
        ],
        out_specs=pl.BlockSpec((1, tc_sc, tf), lambda i, j, k: (i, k, j)),
        out_shape=jax.ShapeDtypeStruct((b, c, f), x.dtype),
        compiler_params=pltpu.CompilerParams(
            dimension_semantics=("parallel", "parallel", "arbitrary"),
            vmem_limit_bytes=vmem3),
        cost_estimate=pl.CostEstimate(
            flops=b * c * f, transcendentals=0,
            bytes_accessed=2 * int(x.size) * itemsize + 2 * b * f * 4),
    )(xf, scale_e)

    return out.reshape(b, c, l, h, w)


# ---------------------------------------------------------------------------
# Pure-JAX reference (faithful replica of the torch serial branch)
# ---------------------------------------------------------------------------
def sta_reference(x, params):
    b, c, l, h, w = x.shape
    hw = h * w
    hi = jax.lax.Precision.HIGHEST
    xt = jnp.transpose(x, (0, 2, 1, 3, 4)).reshape(b, l, c, hw)
    t1 = jnp.einsum("blc,cx->blx", jnp.mean(xt, axis=3), params["At1"],
                    precision=hi)
    t1 = jax.nn.relu(jnp.einsum("rl,blx->brx", params["Et1"], t1, precision=hi))
    t1 = jax.nn.sigmoid(jnp.einsum("lr,brx->blx", params["St1"], t1, precision=hi))
    t2 = jnp.einsum("bls,sx->blx", jnp.mean(xt, axis=2), params["At2"],
                    precision=hi)
    t2 = jax.nn.relu(jnp.einsum("rl,blx->brx", params["Et2"], t2, precision=hi))
    t2 = jax.nn.sigmoid(jnp.einsum("lr,brx->blx", params["St2"], t2, precision=hi))
    s = t1 + t2
    s = s / jnp.mean(s)
    return x * s[:, None, :, :, None]                             # (b,1,l,1,1)


def make_params(key, c, l, h, w, r):
    hw = h * w
    k1, k2, k3, k4, k5, k6 = jax.random.split(key, 6)
    return {
        "At1": jax.random.normal(k1, (c, 1), dtype=jnp.float32) / c,
        "At2": jax.random.normal(k2, (hw, 1), dtype=jnp.float32) / hw,
        "Et1": jax.random.normal(k3, (r * l, l), dtype=jnp.float32) / l,
        "Et2": jax.random.normal(k4, (r * l, l), dtype=jnp.float32) / l,
        "St1": jax.random.normal(k5, (l, r * l), dtype=jnp.float32) / (r * l),
        "St2": jax.random.normal(k6, (l, r * l), dtype=jnp.float32) / (r * l),
    }


if __name__ == "__main__":
    b, c, l, h, w = 2, 4, 8, 8, 8
    r = 4
    key = jax.random.PRNGKey(0)
    kx, kp = jax.random.split(key)
    x = jax.random.normal(kx, (b, c, l, h, w), dtype=jnp.float32)
    params = make_params(kp, c, l, h, w, r)

    out = jax.block_until_ready(sta_forward(x, params))
    ref = jax.block_until_ready(sta_reference(x, params))
    np.testing.assert_allclose(np.asarray(out), np.asarray(ref),
                               rtol=1e-4, atol=1e-5)
    print("KERNEL_OK")
</pallas_src>

<mosaic_0001>
module attributes {stable_mosaic.version = 11 : i64} {
  func.func @_reduce_kernel(%arg0: i32, %arg1: i32, %arg2: i32, %arg3: memref<1x2x8x64xf32, #tpu.memory_space<vmem>>, %arg4: memref<2x1x1xf32, #tpu.memory_space<vmem>>, %arg5: memref<1x64xf32, #tpu.memory_space<vmem>>, %arg6: memref<1x1x8x2xf32, #tpu.memory_space<vmem>>) attributes {dimension_semantics = [#tpu.dimension_semantics<parallel>, #tpu.dimension_semantics<parallel>, #tpu.dimension_semantics<arbitrary>], iteration_bounds = array<i64: 2, 2, 1>, scalar_prefetch = 0 : i64, scratch_operands = 0 : i64, tpu.core_type = #tpu.core_type<tc>, window_params = [{transform_indices = @transform_0, window_bounds = array<i64: 1, 2, 8, 64>}, {transform_indices = @transform_1, window_bounds = array<i64: 2, 1, 1>}, {pipeline_mode = #tpu.pipeline_mode<synchronous>, transform_indices = @transform_2, window_bounds = array<i64: 1, 64>}, {transform_indices = @transform_3, window_bounds = array<i64: 1, 1, 8, 2>}]} {
    %c0_i32 = arith.constant 0 : i32
    %0 = arith.cmpi eq, %arg2, %c0_i32 : i32
    %1 = arith.extui %0 : i1 to i32
    %c0_i32_0 = arith.constant 0 : i32
    %2 = arith.cmpi ne, %1, %c0_i32_0 : i32
    scf.if %2 {
      %cst_20 = arith.constant 0.000000e+00 : f32
      %22 = vector.broadcast %cst_20 : f32 to vector<1x1x8x2xf32>
      %c0_21 = arith.constant 0 : index
      %c0_22 = arith.constant 0 : index
      %c0_23 = arith.constant 0 : index
      %c0_24 = arith.constant 0 : index
      %23 = vector.load %arg6[%c0_21, %c0_22, %c0_23, %c0_24] : memref<1x1x8x2xf32, #tpu.memory_space<vmem>>, vector<1x1x8x2xf32>
      tpu.vector_store %arg6[%c0_21, %c0_22, %c0_23, %c0_24], %22 {strides = array<i32>} : memref<1x1x8x2xf32, #tpu.memory_space<vmem>>, vector<1x1x8x2xf32>,
    } else {
    }
    %c0 = arith.constant 0 : index
    %c0_1 = arith.constant 0 : index
    %c0_2 = arith.constant 0 : index
    %c0_3 = arith.constant 0 : index
    %3 = vector.load %arg3[%c0, %c0_1, %c0_2, %c0_3] : memref<1x2x8x64xf32, #tpu.memory_space<vmem>>, vector<1x2x8x64xf32>
    %4 = vector.shape_cast %3 : vector<1x2x8x64xf32> to vector<2x8x64xf32>
    %c0_4 = arith.constant 0 : index
    %c0_5 = arith.constant 0 : index
    %c0_6 = arith.constant 0 : index
    %5 = vector.load %arg4[%c0_4, %c0_5, %c0_6] : memref<2x1x1xf32, #tpu.memory_space<vmem>>, vector<2x1x1xf32>
    %c0_7 = arith.constant 0 : index
    %c0_8 = arith.constant 0 : index
    %6 = vector.load %arg5[%c0_7, %c0_8] : memref<1x64xf32, #tpu.memory_space<vmem>>, vector<1x64xf32>
    %7 = vector.broadcast %5 : vector<2x1x1xf32> to vector<2x8x64xf32>
    %8 = arith.mulf %4, %7 : vector<2x8x64xf32>
    %cst = arith.constant dense<0.000000e+00> : vector<8x64xf32>
    %9 = vector.multi_reduction <add>, %8, %cst [0] : vector<2x8x64xf32> to vector<8x64xf32>
    %cst_9 = arith.constant dense<0.000000e+00> : vector<8x64xf32>
    %10 = vector.multi_reduction <add>, %4, %cst_9 [0] : vector<2x8x64xf32> to vector<8x64xf32>
    %cst_10 = arith.constant dense<0.000000e+00> : vector<8xf32>
    %11 = vector.multi_reduction <add>, %9, %cst_10 [1] : vector<8x64xf32> to vector<8xf32>
    %12 = vector.shape_cast %11 : vector<8xf32> to vector<8x1xf32>
    %13 = vector.broadcast %6 : vector<1x64xf32> to vector<8x64xf32>
    %14 = arith.mulf %10, %13 : vector<8x64xf32>
    %cst_11 = arith.constant dense<0.000000e+00> : vector<8xf32>
    %15 = vector.multi_reduction <add>, %14, %cst_11 [1] : vector<8x64xf32> to vector<8xf32>
    %16 = vector.shape_cast %15 : vector<8xf32> to vector<8x1xf32>
    %c0_12 = arith.constant 0 : index
    %c0_13 = arith.constant 0 : index
    %c0_14 = arith.constant 0 : index
    %c0_15 = arith.constant 0 : index
    %17 = vector.load %arg6[%c0_12, %c0_13, %c0_14, %c0_15] : memref<1x1x8x2xf32, #tpu.memory_space<vmem>>, vector<1x1x8x2xf32>
    %18 = tpu.concatenate %12, %16 in 1 : vector<8x1xf32>, vector<8x1xf32> -> vector<8x2xf32>
    %19 = vector.shape_cast %18 : vector<8x2xf32> to vector<1x1x8x2xf32>
    %20 = arith.addf %17, %19 : vector<1x1x8x2xf32>
    %c0_16 = arith.constant 0 : index
    %c0_17 = arith.constant 0 : index
    %c0_18 = arith.constant 0 : index
    %c0_19 = arith.constant 0 : index
    %21 = vector.load %arg6[%c0_16, %c0_17, %c0_18, %c0_19] : memref<1x1x8x2xf32, #tpu.memory_space<vmem>>, vector<1x1x8x2xf32>
    tpu.vector_store %arg6[%c0_16, %c0_17, %c0_18, %c0_19], %20 {strides = array<i32>} : memref<1x1x8x2xf32, #tpu.memory_space<vmem>>, vector<1x1x8x2xf32>,
    return
  }
  func.func @transform_0(%arg0: i32, %arg1: i32, %arg2: i32) -> (i32, i32, i32, i32) {
    %c1_i32 = arith.constant 1 : i32
    %0 = arith.muli %arg1, %c1_i32 : i32
    %1 = arith.addi %0, %arg2 : i32
    %c0_i32 = arith.constant 0 : i32
    %c0_i32_0 = arith.constant 0 : i32
    %c0_i32_1 = arith.constant 0 : i32
    return %arg0, %1, %c0_i32, %c0_i32_0 : i32, i32, i32, i32
  }
  func.func @transform_1(%arg0: i32, %arg1: i32, %arg2: i32) -> (i32, i32, i32) {
    %c1_i32 = arith.constant 1 : i32
    %0 = arith.muli %arg1, %c1_i32 : i32
    %1 = arith.addi %0, %arg2 : i32
    %c0_i32 = arith.constant 0 : i32
    %c0_i32_0 = arith.constant 0 : i32
    %c0_i32_1 = arith.constant 0 : i32
    return %1, %c0_i32, %c0_i32_0 : i32, i32, i32
  }
  func.func @transform_2(%arg0: i32, %arg1: i32, %arg2: i32) -> (i32, i32) {
    %c0_i32 = arith.constant 0 : i32
    %c0_i32_0 = arith.constant 0 : i32
    %c0_i32_1 = arith.constant 0 : i32
    return %c0_i32, %c0_i32_0 : i32, i32
  }
  func.func @transform_3(%arg0: i32, %arg1: i32, %arg2: i32) -> (i32, i32, i32, i32) {
    %c0_i32 = arith.constant 0 : i32
    %c0_i32_0 = arith.constant 0 : i32
    %c0_i32_1 = arith.constant 0 : i32
    return %arg0, %arg1, %c0_i32, %c0_i32_0 : i32, i32, i32, i32
  }
}

</mosaic_0001>

<llo_original>
// kernel: tpu_custom_call.1
$region0: #{tpu_custom_call.1}
  #allocation0 [shape = 'u32[]', space=smem, size = 0x4, offset = 0x4, fixed_abs, tag = 'smem constant byte address 0x4 - core index']
  #allocation1 [shape = 'u32[144,128]{1,0:T(1,128)}', space=vmem, size = 0x12000, scoped, tag = 'internal scratch']
  %s0 = inlined_call_operand.hbm [shape: f32[2,4,8,64], index: 0, kind: input, shape index: {}]
  %s1 = inlined_call_operand.vmem [shape: f32[4,1,1], index: 1, kind: input, shape index: {}]
  %s2 = inlined_call_operand.vmem [shape: f32[1,64], index: 2, kind: input, shape index: {}]
  %s3 = inlined_call_operand.vmem [shape: f32[2,2,8,2], index: 3, kind: output, shape index: {}]
  %s4 = sld [smem:[#allocation0]]
  $region53: #{tpu_custom_call.1} parent=0
    _
  %s6 = ssub.s32 1, %s4
  %s7 = scalar_select 0, %s6, %s4
  $region1: #{tpu_custom_call.1} parent=0
    #allocation2 [shape = 'u8[16384]{0}', space=vmem, size = 0x4000, scoped, tag = 'input window, operand 0']
    #allocation3 [shape = 's32[2]{0}', space=sflag, size = 0x8, scoped, tag = 'scoped memory for tpu_custom_call.1']
    %8 = vsyncpa [#allocation3], 0
    %s9 = scalar_lea.sflag [#allocation3], 1
    %10 = vsyncpa %s9, 0
    loop: start=0, step=1, limit=6
    $region2: #{tpu_custom_call.1} parent=1 // loop_pre_header
      _
    $region3: #{tpu_custom_call.1} parent=1 // loop_header
      %s12 = sphi 0, %s16
      %p13 = scmp.ge.s32.totalorder %s12, 6
      %s19 = sphi 0, %s38
      %s20 = sphi 0, %s34
      %s21 = sphi 0, %s30
      %s22 = sphi 0, %s19
      %s23 = sphi 0, %s20
      %s24 = sphi 0, %s21
      %s25 = sphi 0, %s22
      %s26 = sphi 0, %s23
      %s27 = sphi 0, %s24
      %s45 = sphi 0, %s47
      %s48 = sphi 0, %s45
      %s49 = sphi 0, %s48
      %s65 = sphi 0, %s49
      %s73 = sphi 0, %s75
      %s76 = sphi 0, %s73
      %s77 = sphi 0, %s76
      %s93 = sphi 0, %s77
      %s97 = sphi 0, %s97
      %s99 = sphi 0, %s97
      %s100 = sphi 0, %s99
      %s114 = sphi 0, %s100
      %s122 = sphi 0, %s124
      %s125 = sphi 0, %s122
      %s126 = sphi 0, %s125
      %s142 = sphi 0, %s126
    $region4: #{tpu_custom_call.1} parent=1 // loop_header_branch
      %15 = sbr.rel (%p13) target = $region8
    $region5: #{tpu_custom_call.1} parent=1 // loop_body
      %s17 = ssub.s32 %s12, 1
      %s18 = ssub.s32 %s12, 2
      %s28 = sadd.s32 1, %s21
      %p29 = scmp.ge.s32.totalorder %s28, 1
      %s30 = scalar_select %p29, 0, %s28
      %s31 = sadd.s32 1, %s20
      %s32 = scalar_select %p29, %s31, %s20
      %p33 = scmp.ge.s32.totalorder %s32, 2
      %s34 = scalar_select %p33, 0, %s32
      %s35 = sadd.s32 1, %s19
      %s36 = scalar_select %p33, %s35, %s19
      %p37 = scmp.ge.s32.totalorder %s36, 2
      %s38 = scalar_select %p37, 0, %s36
      %s39 = sadd.s32 %s20, %s21
      %s40 = sadd.s32 %s34, %s30
      %s41 = ssub.s32 %s19, %s38
      %s42 = ssub.s32 %s39, %s40
      %s43 = sor.u32 %s41, %s42
      %p44 = scmp.eq.s32.totalorder %s43, 0
      %s46 = sadd.s32 %s45, 1
      %s47 = scalar_select %p44, %s45, %s46
      %p50 = pneg %p44
      %p51 = scmp.eq.s32.totalorder %s12, 3
      %p52 = por %p50, %p51
      %p53 = scmp.ne.s32.totalorder %s45, %s48
      %p54 = scmp.eq.s32.totalorder %s12, 0
      %p55 = por %p53, %p54
      %p56 = scmp.ne.s32.totalorder %s45, %s48
      %p57 = scmp.eq.s32.totalorder %s17, 3
      %p58 = por %p56, %p57
      %p59 = scmp.ne.s32.totalorder %s48, %s49
      %p60 = scmp.eq.s32.totalorder %s17, 0
      %p61 = por %p59, %p60
      %p62 = scmp.ne.s32.totalorder %s48, %s49
      %p63 = scmp.eq.s32.totalorder %s18, 3
      %p64 = por %p62, %p63
      %p66 = scmp.ne.s32.totalorder %s49, %s65
      %p67 = scmp.eq.s32.totalorder %s18, 0
      %p68 = por %p66, %p67
      %s69 = sadd.s32 %s20, %s21
      %s70 = sadd.s32 %s34, %s30
      %s71 = ssub.s32 %s69, %s70
      %p72 = scmp.eq.s32.totalorder %s71, 0
      %s74 = sadd.s32 %s73, 1
      %s75 = scalar_select %p72, %s73, %s74
      %p78 = pneg %p72
      %p79 = scmp.eq.s32.totalorder %s12, 3
      %p80 = por %p78, %p79
      %p81 = scmp.ne.s32.totalorder %s73, %s76
      %p82 = scmp.eq.s32.totalorder %s12, 0
      %p83 = por %p81, %p82
      %p84 = scmp.ne.s32.totalorder %s73, %s76
      %p85 = scmp.eq.s32.totalorder %s17, 3
      %p86 = por %p84, %p85
      %p87 = scmp.ne.s32.totalorder %s76, %s77
      %p88 = scmp.eq.s32.totalorder %s17, 0
      %p89 = por %p87, %p88
      %p90 = scmp.ne.s32.totalorder %s76, %s77
      %p91 = scmp.eq.s32.totalorder %s18, 3
      %p92 = por %p90, %p91
      %p94 = scmp.ne.s32.totalorder %s77, %s93
      %p95 = scmp.eq.s32.totalorder %s18, 0
      %p96 = por %p94, %p95
      %s98 = sadd.s32 %s97, 1
      %p101 = scmp.eq.s32.totalorder %s12, 3
      %p102 = scmp.ne.s32.totalorder %s97, %s99
      %p103 = scmp.eq.s32.totalorder %s12, 0
      %p104 = por %p102, %p103
      %p105 = scmp.ne.s32.totalorder %s97, %s99
      %p106 = scmp.eq.s32.totalorder %s17, 3
      %p107 = por %p105, %p106
      %p108 = scmp.ne.s32.totalorder %s99, %s100
      %p109 = scmp.eq.s32.totalorder %s17, 0
      %p110 = por %p108, %p109
      %p111 = scmp.ne.s32.totalorder %s99, %s100
      %p112 = scmp.eq.s32.totalorder %s18, 3
      %p113 = por %p111, %p112
      %p115 = scmp.ne.s32.totalorder %s100, %s114
      %p116 = scmp.eq.s32.totalorder %s18, 0
      %p117 = por %p115, %p116
      %s118 = ssub.s32 %s19, %s38
      %s119 = ssub.s32 %s20, %s34
      %s120 = sor.u32 %s118, %s119
      %p121 = scmp.eq.s32.totalorder %s120, 0
      %s123 = sadd.s32 %s122, 1
      %s124 = scalar_select %p121, %s122, %s123
      %p127 = pneg %p121
      %p128 = scmp.eq.s32.totalorder %s12, 3
      %p129 = por %p127, %p128
      %p130 = scmp.ne.s32.totalorder %s122, %s125
      %p131 = scmp.eq.s32.totalorder %s12, 0
      %p132 = por %p130, %p131
      %p133 = scmp.ne.s32.totalorder %s122, %s125
      %p134 = scmp.eq.s32.totalorder %s17, 3
      %p135 = por %p133, %p134
      %p136 = scmp.ne.s32.totalorder %s125, %s126
      %p137 = scmp.eq.s32.totalorder %s17, 0
      %p138 = por %p136, %p137
      %p139 = scmp.ne.s32.totalorder %s125, %s126
      %p140 = scmp.eq.s32.totalorder %s18, 3
      %p141 = por %p139, %p140
      %p143 = scmp.ne.s32.totalorder %s126, %s142
      %p144 = scmp.eq.s32.totalorder %s18, 0
      %p145 = por %p143, %p144
      %p146 = scmp.le.s32.totalorder 1, %s12
      %p147 = scmp.lt.s32.totalorder %s12, 5
      %p148 = pnand %p146, %p147
      %p149 = pneg %p148
      // Predicated region
      $region9: #{tpu_custom_call.1} parent=5 // pred_check
        _
      $region10: #{tpu_custom_call.1} parent=5 // pred_check_branch
        %151 = sbr.rel (%p148) target = $region12
      $region11: #{tpu_custom_call.1} parent=5 // pred_region
        %s152 = ssub.s32 %s12, 1
        // Predicated region
        $region13: #{tpu_custom_call.1} parent=11 // pred_check
          %p153 = pneg %p110
        $region14: #{tpu_custom_call.1} parent=11 // pred_check_branch
          %155 = sbr.rel (%p153) target = $region16
        $region15: #{tpu_custom_call.1} parent=11 // pred_region
          _
        $region16: #{tpu_custom_call.1} parent=11 // pred_fallthru
          _
      $region12: #{tpu_custom_call.1} parent=5 // pred_fallthru
        _
      %p156 = scmp.lt.s32.totalorder %s12, 4
      // Predicated region
      $region17: #{tpu_custom_call.1} parent=5 // pred_check
        %p157 = pneg %p156
      $region18: #{tpu_custom_call.1} parent=5 // pred_check_branch
        %159 = sbr.rel (%p157) target = $region20
      $region19: #{tpu_custom_call.1} parent=5 // pred_region
        // Predicated region
        $region21: #{tpu_custom_call.1} parent=19 // pred_check
          %p160 = pneg %p55
        $region22: #{tpu_custom_call.1} parent=19 // pred_check_branch
          %162 = sbr.rel (%p160) target = $region24
        $region23: #{tpu_custom_call.1} parent=19 // pred_region
          %s163 = sand.u32 %s45, 1
          %s164 = scalar_lea.sflag [#allocation3], %s163
          %s165 = sand.u32 %s45, 1
          %s166 = smul.addr %s165, 16
          %s167 = scalar_lea.vmem [#allocation2], %s166
          %s168 = sadd.s32 %s20, %s21
          %s169 = smul.u32 2, %s168
          %s171 = ssub.s32 256, 256
          %172 = vsyncadd %s164, %s171
          %s173 = smul.addr %s19, 4
          %s174 = sadd.s32 %s169, %s173
          %s175 = smul.addr %s174, 128
          %s176 = scalar_lea.hbm %s0, %s175
          %s177 = sshll.u32 %s167, 4
          %s178 = int_to_ptr.vmem [resolvable:$true] %s177
          %183 = dma.hbm_to_vmem [thread:$0]  %s176, 256, %s178, %s164, 128, 128, 8
        $region24: #{tpu_custom_call.1} parent=19 // pred_fallthru
          _
        // Predicated region
        $region25: #{tpu_custom_call.1} parent=19 // pred_check
          %p184 = pneg %p83
        $region26: #{tpu_custom_call.1} parent=19 // pred_check_branch
          %186 = sbr.rel (%p184) target = $region28
        $region27: #{tpu_custom_call.1} parent=19 // pred_region
          %s187 = sadd.s32 %s20, %s21
          %s188 = smul.u32 2, %s187
          %p189 = scmp.lt.s32.totalorder %s188, 3
          %s190 = scalar_select %p189, %s188, 3
          %s191 = scalar_lea.vmem %s1, %s190
          %s192 = sadd.s32 %s20, %s21
          %s193 = smul.u32 2, %s192
        $region28: #{tpu_custom_call.1} parent=19 // pred_fallthru
          _
      $region20: #{tpu_custom_call.1} parent=5 // pred_fallthru
        _
      %p194 = scmp.le.s32.totalorder 1, %s12
      %p195 = scmp.lt.s32.totalorder %s12, 5
      %p196 = pnand %p194, %p195
      %p197 = pneg %p196
      // Predicated region
      $region29: #{tpu_custom_call.1} parent=5 // pred_check
        _
      $region30: #{tpu_custom_call.1} parent=5 // pred_check_branch
        %199 = sbr.rel (%p196) target = $region32
      $region31: #{tpu_custom_call.1} parent=5 // pred_region
        %s200 = ssub.s32 %s12, 1
        %s201 = sand.u32 %s48, 1
        %s202 = scalar_lea.sflag [#allocation3], %s201
        %s203 = sand.u32 %s48, 1
        %s204 = smul.addr %s203, 16
        %s205 = scalar_lea.vmem [#allocation2], %s204
        // Predicated region
        $region33: #{tpu_custom_call.1} parent=31 // pred_check
          %p206 = pneg %p61
        $region34: #{tpu_custom_call.1} parent=31 // pred_check_branch
          %208 = sbr.rel (%p206) target = $region36
        $region35: #{tpu_custom_call.1} parent=31 // pred_region
          %209 = dma.done %s202, 256
        $region36: #{tpu_custom_call.1} parent=31 // pred_fallthru
          _
        %s210 = sand.u32 %s48, 1
        %s211 = scalar_lea.sflag [#allocation3], %s210
        %s212 = sand.u32 %s48, 1
        %s213 = smul.addr %s212, 16
        %s214 = scalar_lea.vmem [#allocation2], %s213
        %p215 = pneg %p61
        %p216 = pneg %p58
        %s217 = sadd.s32 %s23, %s24
        %s218 = smul.u32 2, %s217
        %p219 = scmp.lt.s32.totalorder %s218, 3
        %s220 = scalar_select %p219, %s218, 3
        %s221 = scalar_lea.vmem %s1, %s220
        %p222 = pneg %p89
        %p223 = pneg %p86
        %p224 = pneg %p110
        %p225 = pneg %p107
        %p226 = pneg %p138
        %p227 = pneg %p135
        %p228 = scmp.lt.s32.totalorder %s22, 1
        %s229 = scalar_select %p228, %s22, 1
        %p230 = scmp.lt.s32.totalorder %s23, 1
        %s231 = scalar_select %p230, %s23, 1
        %s232 = smul.addr %s229, 2
        %s233 = sadd.s32 %s231, %s232
        %s234 = smul.addr %s233, 8
        %s235 = scalar_lea.vmem %s3, %s234
        %s236 = sadd.s32 %s23, %s24
        %s237 = smul.u32 2, %s236
        %s238 = sadd.s32 %s23, %s24
        %s239 = smul.u32 2, %s238
        %p240 = scmp.lt.s32.totalorder %s239, 3
        %s241 = scalar_select %p240, %s239, 3
        %s242 = scalar_lea.vmem %s1, %s241
        %s243 = sadd.s32 %s23, %s24
        %s244 = smul.u32 2, %s243
        %p245 = scmp.lt.s32.totalorder %s22, 1
        %s246 = scalar_select %p245, %s22, 1
        %p247 = scmp.lt.s32.totalorder %s23, 1
        %s248 = scalar_select %p247, %s23, 1
        %s249 = smul.addr %s246, 2
        %s250 = sadd.s32 %s248, %s249
        %s251 = smul.addr %s250, 8
        %s252 = scalar_lea.vmem %s3, %s251
        %p253 = scmp.eq.s32.totalorder %s24, 0
        // Predicated region
        $region37: #{tpu_custom_call.1} parent=31 // pred_check
          %p254 = pneg %p253
        $region38: #{tpu_custom_call.1} parent=31 // pred_check_branch
          %256 = sbr.rel (%p254) target = $region40
        $region39: #{tpu_custom_call.1} parent=31 // pred_region
          %vm257 = vcmask 15360
          %258 = vst.msk [vmem:[%s252] sm:$0xff] %vm257, 0.0
        $region40: #{tpu_custom_call.1} parent=31 // pred_fallthru
          _
        %v259 = vld [vmem:[%s205] sm:$0xff]
        %v260 = vld [vmem:[%s205 + $0x8] sm:$0xff]
        %v261 = vld [vmem:[%s242] sm:$0x1]
        %v262 = vld [vmem:[%s242 + $0x1] sm:$0x1]
        %v263 = vld [vmem:[%s2] sm:$0x1]
        %v266 = vlaneseq
        %v267 = vshrl.u32 %v266, 7
        %v268 = vsub.s32 0, %v267
        %v269 = vrot.slane %v261, %v268
        %v270 = vlaneseq
        %v271 = vshrl.u32 %v270, 7
        %v272 = vsub.s32 0, %v271
        %v273 = vrot.slane %v262, %v272
        %274 = vset.pattern.permute.xlu0 0
        %275 = vperm.xlu0 %274, %v269
        %v276 = vpop.permute.xlu0 %275
        %278 = vset.pattern.permute.xlu0 0
        %279 = vperm.xlu0 %278, %v273
        %v280 = vpop.permute.xlu0 %279
        %v282 = vmul.f32 %v259, %v276
        %v283 = vmul.f32 %v260, %v280
        %vm284 = vcmask 523264
        %v285 = vsel %vm284, %v282, 0.0
        %v286 = vsel %vm284, %v283, 0.0
        %v287 = vadd.f32 %v285, %v286
        %v288 = vsel %vm284, %v259, 0.0
        %v289 = vsel %vm284, %v260, 0.0
        %v290 = vadd.f32 %v288, %v289
        %v291 = vsel %vm284, %v287, 0.0
        %292 = vadd.xlane.f32.xlu0 %v291
        %v293 = vpop.xlane.xlu0 %292
        %v295 = vlaneseq
        %v296 = vshrl.u32 %v295, 7
        %v297 = vsub.s32 0, %v296
        %v298 = vrot.slane %v263, %v297
        %v300 = vmul.f32 %v290, %v298
        %v301 = vsel %vm284, %v300, 0.0
        %302 = vadd.xlane.f32.xlu0 %v301
        %v303 = vpop.xlane.xlu0 %302
        %v304 = vld [vmem:[%s252] sm:$0xff]
        %vm305 = vcmask 7168
        %v306 = vsel %vm305, %v293, %v303
        %v307 = vadd.f32 %v304, %v306
        %vm308 = vcmask 15360
        %309 = vst.msk [vmem:[%s252] sm:$0xff] %vm308, %v307
        %p310 = scmp.lt.s32.totalorder %s22, 1
        %s311 = scalar_select %p310, %s22, 1
        %p312 = scmp.lt.s32.totalorder %s23, 1
        %s313 = scalar_select %p312, %s23, 1
        %s314 = smul.addr %s311, 2
        %s315 = sadd.s32 %s313, %s314
        %s316 = smul.addr %s315, 8
        %s317 = scalar_lea.vmem %s3, %s316
        // Predicated region
        $region41: #{tpu_custom_call.1} parent=31 // pred_check
          %p318 = pneg %p135
        $region42: #{tpu_custom_call.1} parent=31 // pred_check_branch
          %320 = sbr.rel (%p318) target = $region44
        $region43: #{tpu_custom_call.1} parent=31 // pred_region
          _
        $region44: #{tpu_custom_call.1} parent=31 // pred_fallthru
          _
      $region32: #{tpu_custom_call.1} parent=5 // pred_fallthru
        _
      %p321 = scmp.le.s32.totalorder 2, %s12
      // Predicated region
      $region45: #{tpu_custom_call.1} parent=5 // pred_check
        %p322 = pneg %p321
      $region46: #{tpu_custom_call.1} parent=5 // pred_check_branch
        %324 = sbr.rel (%p322) target = $region48
      $region47: #{tpu_custom_call.1} parent=5 // pred_region
        %s325 = ssub.s32 %s12, 2
        // Predicated region
        $region49: #{tpu_custom_call.1} parent=47 // pred_check
          %p326 = pneg %p141
        $region50: #{tpu_custom_call.1} parent=47 // pred_check_branch
          %328 = sbr.rel (%p326) target = $region52
        $region51: #{tpu_custom_call.1} parent=47 // pred_region
          %p329 = scmp.lt.s32.totalorder %s25, 1
          %s330 = scalar_select %p329, %s25, 1
          %p331 = scmp.lt.s32.totalorder %s26, 1
          %s332 = scalar_select %p331, %s26, 1
          %s333 = smul.addr %s330, 2
          %s334 = sadd.s32 %s332, %s333
          %s335 = smul.addr %s334, 8
          %s336 = scalar_lea.vmem %s3, %s335
        $region52: #{tpu_custom_call.1} parent=47 // pred_fallthru
          _
      $region48: #{tpu_custom_call.1} parent=5 // pred_fallthru
        _
    $region6: #{tpu_custom_call.1} parent=1 // loop_footer
      %s16 = sadd.s32 1, %s12
    $region7: #{tpu_custom_call.1} parent=1 // loop_footer_branch
      %11 = sbr.rel target = $region3
    $region8: #{tpu_custom_call.1} parent=1 // loop_exit
      _
    %337 = vsyncpa [#allocation3], 1
    %s338 = scalar_lea.sflag [#allocation3], 1
    %339 = vsyncpa %s338, 1

</llo_original>
